<compile_context>
chip_gen: v7x
topology: tpu7x:2x2x1
jax: 0.10.0
libtpu: 0.0.40
codegen_flags: <defaults>
</compile_context>

<pallas_src>
import functools

import jax
import jax.numpy as jnp
from jax.experimental import pallas as pl
from jax.experimental.pallas import tpu as pltpu

LANES = 128
SUBLANES = 16          # dtype-safe sublane alignment (covers f32 and bf16 callers)
MAX_TILE_R = 4096      # (4096, 128) f32 block = 2 MiB per input per pipeline buffer


def _round_up(a, b):
    return (a + b - 1) // b * b


def _dice_bce_partials_kernel(x_ref, t_ref, out_ref, *, tail, needs_mask):
    """Writes one (1, 24, 128) fused partial block: rows 0:8 = bce, 8:16 = p*t, 16:24 = p+t."""
    tile_r, lanes = x_ref.shape

    def elementwise(x, t):
        # Faithful to the PyTorch module: sigmoid first, then BCEWithLogitsLoss applied to
        # the *probabilities* (double sigmoid).  Sigmoid written in exact tanh form (1 EUP
        # op, no divide).  Since p in (0,1), the stable logits form
        # max(z,0) - z*t + log1p(exp(-|z|)) simplifies to p - p*t + log1p(exp(-p)).
        # NOTE: that simplification is only valid because p = sigmoid(x) > 0; do not reuse
        # this formula for a true BCEWithLogits on raw logits.
        p = 0.5 * (jnp.tanh(0.5 * x) + 1.0)
        bce = p - p * t + jnp.log1p(jnp.exp(-p))
        return bce, p * t, p + t

    def reduce_to_vreg(v):
        # (tile_r, 128) -> (8, 128): layout-preserving reshape + pure VALU vreg adds
        # (no XLU cross-lane reduction, no VMEM round-trip).
        return jnp.sum(v.reshape(tile_r // 8, 8, lanes), axis=0)

    def write(bce, pt, s):
        out_ref[0, 0:8, :] = reduce_to_vreg(bce)
        out_ref[0, 8:16, :] = reduce_to_vreg(pt)
        out_ref[0, 16:24, :] = reduce_to_vreg(s)

    x_raw = x_ref[...].astype(jnp.float32)
    t_raw = t_ref[...].astype(jnp.float32)

    if needs_mask:
        i = pl.program_id(0)
        last = pl.num_programs(0) - 1

        @pl.when(i != last)
        def _():
            write(*elementwise(x_raw, t_raw))

        @pl.when(i == last)
        def _():
            # Static tail count (Python int): no global-index computation, no i32 overflow.
            row = jax.lax.broadcasted_iota(jnp.int32, (tile_r, lanes), 0)
            col = jax.lax.broadcasted_iota(jnp.int32, (tile_r, lanes), 1)
            valid = (row * lanes + col) < tail
            # Neutralize padding / partial-block garbage BEFORE the transcendentals.
            x = jnp.where(valid, x_raw, 0.0)
            t = jnp.where(valid, t_raw, 0.0)
            bce, pt, s = elementwise(x, t)
            write(jnp.where(valid, bce, 0.0),
                  jnp.where(valid, pt, 0.0),
                  jnp.where(valid, s, 0.0))
    else:
        write(*elementwise(x_raw, t_raw))


def dice_loss_bce(inputs, targets, alpha=0.5, smooth=1.0):
    """Pallas implementation of DiceLoss_BCE.forward. Returns a float32 scalar."""
    x = jnp.reshape(inputs, (-1,))
    t = jnp.reshape(targets, (-1,))
    n = x.shape[0]

    # Pad only up to a multiple of (16, 128) so the 2-D reshape and sublane tiling are
    # always legal; the in-kernel tail mask removes padded / garbage contributions.
    n_pad = _round_up(n, SUBLANES * LANES)
    if n_pad != n:
        x = jnp.pad(x, (0, n_pad - n))
        t = jnp.pad(t, (0, n_pad - n))
    rows = n_pad // LANES
    x2 = x.reshape(rows, LANES)
    t2 = t.reshape(rows, LANES)

    # Tile choice: big blocks to amortize per-step pipeline overhead, but split into at
    # least 2 blocks when the whole input would fit in one tile, so the fully "parallel"
    # grid keeps both v7x TensorCores busy.  tile_r stays a multiple of 16.
    if rows <= 2 * MAX_TILE_R:
        tile_r = max(SUBLANES, min(MAX_TILE_R, _round_up(rows // 2, SUBLANES)))
    else:
        tile_r = MAX_TILE_R
    num_blocks = _round_up(rows, tile_r) // tile_r        # last block may be partial
    covered = num_blocks * tile_r * LANES
    needs_mask = (covered != n)
    tail = n - (num_blocks - 1) * tile_r * LANES          # valid elems in the last block

    kernel = functools.partial(_dice_bce_partials_kernel,
                               tail=tail, needs_mask=needs_mask)

    in_spec = pl.BlockSpec((tile_r, LANES), lambda i: (i, 0))
    out_spec = pl.BlockSpec((1, 3 * 8, LANES), lambda i: (i, 0, 0))

    parts = pl.pallas_call(
        kernel,
        out_shape=jax.ShapeDtypeStruct((num_blocks, 3 * 8, LANES), jnp.float32),
        grid_spec=pltpu.PrefetchScalarGridSpec(
            num_scalar_prefetch=0,
            grid=(num_blocks,),
            in_specs=[in_spec, in_spec],
            out_specs=out_spec,
        ),
        compiler_params=pltpu.CompilerParams(
            dimension_semantics=("parallel",)),
    )(x2, t2)

    # Tiny final combine (scalar math) done in the JAX wrapper so the grid stays fully
    # parallel on v7x; one fused output -> one reduction source.
    bce = jnp.sum(parts[:, 0:8, :]) / jnp.float32(n)
    inter = jnp.sum(parts[:, 8:16, :])
    denom = jnp.sum(parts[:, 16:24, :])
    dice = (2.0 * inter + smooth) / (denom + smooth)
    return (alpha * bce + alpha * (1.0 - dice)).astype(jnp.float32)


def _reference(inputs, targets, alpha=0.5, smooth=1.0):
    x = jnp.reshape(inputs, (-1,)).astype(jnp.float32)
    t = jnp.reshape(targets, (-1,)).astype(jnp.float32)
    p = jax.nn.sigmoid(x)
    # BCEWithLogitsLoss applied to the probabilities, matching the PyTorch module.
    bce = jnp.mean(jnp.maximum(p, 0.0) - p * t + jnp.log1p(jnp.exp(-jnp.abs(p))))
    inter = jnp.sum(p * t)
    dice = (2.0 * inter + smooth) / (jnp.sum(p) + jnp.sum(t) + smooth)
    return alpha * bce + alpha * (1.0 - dice)


if __name__ == "__main__":
    key = jax.random.PRNGKey(0)
    k1, k2 = jax.random.split(key)
    # NCHW logits and binary targets, small shapes.
    inputs = jax.random.normal(k1, (2, 4, 16, 16), dtype=jnp.float32)
    targets = (jax.random.uniform(k2, (2, 4, 16, 16)) > 0.5).astype(jnp.float32)

    loss = dice_loss_bce(inputs, targets, alpha=0.5, smooth=1.0)
    loss = jax.block_until_ready(loss)

    ref = jax.block_until_ready(_reference(inputs, targets, alpha=0.5, smooth=1.0))
    assert jnp.allclose(loss, ref, atol=1e-5, rtol=1e-5), (loss, ref)
    print("KERNEL_OK")
</pallas_src>

<mosaic_0001>
module attributes {stable_mosaic.version = 11 : i64} {
  func.func @_dice_bce_partials_kernel(%arg0: i32, %arg1: memref<16x128xf32, #tpu.memory_space<vmem>>, %arg2: memref<16x128xf32, #tpu.memory_space<vmem>>, %arg3: memref<1x24x128xf32, #tpu.memory_space<vmem>>) attributes {dimension_semantics = [#tpu.dimension_semantics<parallel>], iteration_bounds = array<i64: 1>, scalar_prefetch = 0 : i64, scratch_operands = 0 : i64, tpu.core_type = #tpu.core_type<tc>, window_params = [{transform_indices = @transform_0, window_bounds = array<i64: 16, 128>}, {transform_indices = @transform_1, window_bounds = array<i64: 16, 128>}, {transform_indices = @transform_2, window_bounds = array<i64: 1, 24, 128>}]} {
    %c0 = arith.constant 0 : index
    %c0_0 = arith.constant 0 : index
    %0 = vector.load %arg1[%c0, %c0_0] : memref<16x128xf32, #tpu.memory_space<vmem>>, vector<16x128xf32>
    %c0_1 = arith.constant 0 : index
    %c0_2 = arith.constant 0 : index
    %1 = vector.load %arg2[%c0_1, %c0_2] : memref<16x128xf32, #tpu.memory_space<vmem>>, vector<16x128xf32>
    %cst = arith.constant 5.000000e-01 : f32
    %2 = vector.broadcast %cst : f32 to vector<16x128xf32>
    %3 = arith.mulf %2, %0 : vector<16x128xf32>
    %4 = math.tanh %3 : vector<16x128xf32>
    %cst_3 = arith.constant 1.000000e+00 : f32
    %5 = vector.broadcast %cst_3 : f32 to vector<16x128xf32>
    %6 = arith.addf %4, %5 : vector<16x128xf32>
    %cst_4 = arith.constant 5.000000e-01 : f32
    %7 = vector.broadcast %cst_4 : f32 to vector<16x128xf32>
    %8 = arith.mulf %7, %6 : vector<16x128xf32>
    %9 = arith.mulf %8, %1 : vector<16x128xf32>
    %10 = arith.subf %8, %9 : vector<16x128xf32>
    %cst_5 = arith.constant 0.000000e+00 : f32
    %11 = vector.broadcast %cst_5 : f32 to vector<16x128xf32>
    %12 = arith.subf %11, %8 : vector<16x128xf32>
    %13 = math.exp %12 : vector<16x128xf32>
    %14 = math.log1p %13 : vector<16x128xf32>
    %15 = arith.addf %10, %14 : vector<16x128xf32>
    %16 = arith.mulf %8, %1 : vector<16x128xf32>
    %17 = arith.addf %8, %1 : vector<16x128xf32>
    %18 = vector.shape_cast %15 : vector<16x128xf32> to vector<2x8x128xf32>
    %cst_6 = arith.constant dense<0.000000e+00> : vector<8x128xf32>
    %19 = vector.multi_reduction <add>, %18, %cst_6 [0] : vector<2x8x128xf32> to vector<8x128xf32>
    %c0_7 = arith.constant 0 : index
    %c0_8 = arith.constant 0 : index
    %c0_9 = arith.constant 0 : index
    %20 = vector.load %arg3[%c0_7, %c0_8, %c0_9] : memref<1x24x128xf32, #tpu.memory_space<vmem>>, vector<1x8x128xf32>
    %21 = vector.shape_cast %20 : vector<1x8x128xf32> to vector<8x128xf32>
    %22 = vector.shape_cast %19 : vector<8x128xf32> to vector<1x8x128xf32>
    tpu.vector_store %arg3[%c0_7, %c0_8, %c0_9], %22 {strides = array<i32>} : memref<1x24x128xf32, #tpu.memory_space<vmem>>, vector<1x8x128xf32>,
    %23 = vector.shape_cast %16 : vector<16x128xf32> to vector<2x8x128xf32>
    %cst_10 = arith.constant dense<0.000000e+00> : vector<8x128xf32>
    %24 = vector.multi_reduction <add>, %23, %cst_10 [0] : vector<2x8x128xf32> to vector<8x128xf32>
    %c0_11 = arith.constant 0 : index
    %c8 = arith.constant 8 : index
    %c0_12 = arith.constant 0 : index
    %25 = vector.load %arg3[%c0_11, %c8, %c0_12] : memref<1x24x128xf32, #tpu.memory_space<vmem>>, vector<1x8x128xf32>
    %26 = vector.shape_cast %25 : vector<1x8x128xf32> to vector<8x128xf32>
    %27 = vector.shape_cast %24 : vector<8x128xf32> to vector<1x8x128xf32>
    tpu.vector_store %arg3[%c0_11, %c8, %c0_12], %27 {strides = array<i32>} : memref<1x24x128xf32, #tpu.memory_space<vmem>>, vector<1x8x128xf32>,
    %28 = vector.shape_cast %17 : vector<16x128xf32> to vector<2x8x128xf32>
    %cst_13 = arith.constant dense<0.000000e+00> : vector<8x128xf32>
    %29 = vector.multi_reduction <add>, %28, %cst_13 [0] : vector<2x8x128xf32> to vector<8x128xf32>
    %c0_14 = arith.constant 0 : index
    %c16 = arith.constant 16 : index
    %c0_15 = arith.constant 0 : index
    %30 = vector.load %arg3[%c0_14, %c16, %c0_15] : memref<1x24x128xf32, #tpu.memory_space<vmem>>, vector<1x8x128xf32>
    %31 = vector.shape_cast %30 : vector<1x8x128xf32> to vector<8x128xf32>
    %32 = vector.shape_cast %29 : vector<8x128xf32> to vector<1x8x128xf32>
    tpu.vector_store %arg3[%c0_14, %c16, %c0_15], %32 {strides = array<i32>} : memref<1x24x128xf32, #tpu.memory_space<vmem>>, vector<1x8x128xf32>,
    return
  }
  func.func @transform_0(%arg0: i32) -> (i32, i32) {
    %c0_i32 = arith.constant 0 : i32
    %c0_i32_0 = arith.constant 0 : i32
    return %arg0, %c0_i32 : i32, i32
  }
  func.func @transform_1(%arg0: i32) -> (i32, i32) {
    %c0_i32 = arith.constant 0 : i32
    %c0_i32_0 = arith.constant 0 : i32
    return %arg0, %c0_i32 : i32, i32
  }
  func.func @transform_2(%arg0: i32) -> (i32, i32, i32) {
    %c0_i32 = arith.constant 0 : i32
    %c0_i32_0 = arith.constant 0 : i32
    %c0_i32_1 = arith.constant 0 : i32
    return %arg0, %c0_i32, %c0_i32_0 : i32, i32, i32
  }
}

</mosaic_0001>

<llo_original>
// kernel: tpu_custom_call.1
$region0: #{tpu_custom_call.1}
  #allocation0 [shape = 'u32[]', space=smem, size = 0x4, offset = 0x4, fixed_abs, tag = 'smem constant byte address 0x4 - core index']
  #allocation1 [shape = 'u32[144,128]{1,0:T(1,128)}', space=vmem, size = 0x12000, scoped, tag = 'internal scratch']
  %s0 = inlined_call_operand.hbm [shape: f32[16,128], index: 0, kind: input, shape index: {}]
  %s1 = inlined_call_operand.hbm [shape: f32[16,128], index: 1, kind: input, shape index: {}]
  %s2 = inlined_call_operand.hbm [shape: f32[1,24,128], index: 2, kind: output, shape index: {}]
  %s3 = sld [smem:[#allocation0]]
  $region26: #{tpu_custom_call.1} parent=0
    _
  %s5 = ssub.s32 1, %s3
  %s6 = scalar_select 0, %s5, %s3
  $region1: #{tpu_custom_call.1} parent=0
    #allocation2 [shape = 'u8[8192]{0}', space=vmem, size = 0x2000, scoped, tag = 'input window, operand 0, single buffered']
    #allocation3 [shape = 's32[1]{0}', space=sflag, size = 0x4, scoped, tag = 'scoped memory for tpu_custom_call.1']
    #allocation4 [shape = 's32[1]{0}', space=sflag, size = 0x4, scoped, tag = 'scoped memory for tpu_custom_call.1']
    #allocation5 [shape = 'u8[8192]{0}', space=vmem, size = 0x2000, scoped, tag = 'input window, operand 1, single buffered']
    #allocation6 [shape = 's32[1]{0}', space=sflag, size = 0x4, scoped, tag = 'scoped memory for tpu_custom_call.1']
    #allocation7 [shape = 'u8[12288]{0}', space=vmem, size = 0x3000, scoped, tag = 'output window, operand 0, single buffered']
    %7 = vsyncpa [#allocation3], 0
    %8 = vsyncpa [#allocation6], 0
    %9 = vsyncpa [#allocation4], 0
    // Predicated region
    $region2: #{tpu_custom_call.1} parent=1 // pred_check
      _
    $region3: #{tpu_custom_call.1} parent=1 // pred_check_branch
      %11 = sbr.rel (0) target = $region5
    $region4: #{tpu_custom_call.1} parent=1 // pred_region
      %s13 = ssub.s32 256, 256
      %14 = vsyncadd [#allocation3], %s13
      %s15 = sshll.u32 [#allocation2], 4
      %s16 = int_to_ptr.vmem [resolvable:$true] %s15
      %21 = dma.hbm_to_vmem [thread:$0]  %s0, 256, %s16, [#allocation3], 128, 128, 8
    $region5: #{tpu_custom_call.1} parent=1 // pred_fallthru
      _
    // Predicated region
    $region6: #{tpu_custom_call.1} parent=1 // pred_check
      _
    $region7: #{tpu_custom_call.1} parent=1 // pred_check_branch
      %23 = sbr.rel (0) target = $region9
    $region8: #{tpu_custom_call.1} parent=1 // pred_region
      %s25 = ssub.s32 256, 256
      %26 = vsyncadd [#allocation6], %s25
      %s27 = sshll.u32 [#allocation5], 4
      %s28 = int_to_ptr.vmem [resolvable:$true] %s27
      %33 = dma.hbm_to_vmem [thread:$0]  %s1, 256, %s28, [#allocation6], 128, 128, 8
    $region9: #{tpu_custom_call.1} parent=1 // pred_fallthru
      _
    // Predicated region
    $region10: #{tpu_custom_call.1} parent=1 // pred_check
      _
    $region11: #{tpu_custom_call.1} parent=1 // pred_check_branch
      %35 = sbr.rel (0) target = $region13
    $region12: #{tpu_custom_call.1} parent=1 // pred_region
      %36 = dma.done [#allocation3], 256
    $region13: #{tpu_custom_call.1} parent=1 // pred_fallthru
      _
    // Predicated region
    $region14: #{tpu_custom_call.1} parent=1 // pred_check
      _
    $region15: #{tpu_custom_call.1} parent=1 // pred_check_branch
      %38 = sbr.rel (0) target = $region17
    $region16: #{tpu_custom_call.1} parent=1 // pred_region
      %39 = dma.done [#allocation6], 256
    $region17: #{tpu_custom_call.1} parent=1 // pred_fallthru
      _
    %v40 = vld [vmem:[#allocation2] sm:$0xff]
    %v41 = vld [vmem:[#allocation2 + $0x8] sm:$0xff]
    %v42 = vld [vmem:[#allocation5] sm:$0xff]
    %v43 = vld [vmem:[#allocation5 + $0x8] sm:$0xff]
    %v44 = vmul.f32 %v40, 0.5
    %v45 = vmul.f32 %v41, 0.5
    %v46 = vtanh.pop %v44
    %v47 = vtanh.pop %v45
    %v48 = vadd.f32 %v46, 1.0
    %v49 = vadd.f32 %v47, 1.0
    %v50 = vmul.f32 %v48, 0.5
    %v51 = vmul.f32 %v49, 0.5
    %v52 = vmul.f32 %v50, %v42
    %v53 = vmul.f32 %v51, %v43
    %v54 = vsub.f32 %v50, %v52
    %v55 = vsub.f32 %v51, %v53
    %v56 = vsub.f32 0.0, %v50
    %v57 = vsub.f32 0.0, %v51
    %v58 = vmul.f32 %v56, 1.442695
    %v59 = vpow.pop %v58
    %v60 = vmul.f32 %v57, 1.442695
    %v61 = vpow.pop %v60
    %v62 = vadd.f32 %v59, 1.0
    %v63 = vlog2.pop %v62
    %v64 = vmul.f32 %v63, 0.6931472
    %v65 = vmul.f32 -0.5, %v59
    %v66 = vadd.f32 %v65, 1.0
    %v67 = vmul.f32 %v66, %v59
    %v68 = vand.u32 2147483647, %v59
    %vm69 = vcmp.lt.f32.partialorder %v68, 0.0004427343
    %v70 = vsel %vm69, %v67, %v64
    %v71 = vadd.f32 %v61, 1.0
    %v72 = vlog2.pop %v71
    %v73 = vmul.f32 %v72, 0.6931472
    %v74 = vmul.f32 -0.5, %v61
    %v75 = vadd.f32 %v74, 1.0
    %v76 = vmul.f32 %v75, %v61
    %v77 = vand.u32 2147483647, %v61
    %vm78 = vcmp.lt.f32.partialorder %v77, 0.0004427343
    %v79 = vsel %vm78, %v76, %v73
    %v80 = vadd.f32 %v54, %v70
    %v81 = vadd.f32 %v55, %v79
    %v82 = vadd.f32 %v50, %v42
    %v83 = vadd.f32 %v51, %v43
    %v84 = vadd.f32 %v80, %v81
    %85 = vst [vmem:[#allocation7] sm:$0xff] %v84
    %v86 = vadd.f32 %v52, %v53
    %87 = vst [vmem:[#allocation7 + $0x8] sm:$0xff] %v86
    %v88 = vadd.f32 %v82, %v83
    %89 = vst [vmem:[#allocation7 + $0x10] sm:$0xff] %v88
    // Predicated region
    $region18: #{tpu_custom_call.1} parent=1 // pred_check
      _
    $region19: #{tpu_custom_call.1} parent=1 // pred_check_branch
      %91 = sbr.rel (0) target = $region21
    $region20: #{tpu_custom_call.1} parent=1 // pred_region
      %s93 = ssub.s32 384, 384
      %94 = vsyncadd [#allocation4], %s93
      %s95 = sshll.u32 [#allocation7], 4
      %s96 = int_to_ptr.vmem [resolvable:$true] %s95
      %101 = dma.vmem_to_hbm [thread:$0]  %s96, 384, %s2, [#allocation4], 128, 128, 8
    $region21: #{tpu_custom_call.1} parent=1 // pred_fallthru
      _
    // Predicated region
    $region22: #{tpu_custom_call.1} parent=1 // pred_check
      _
    $region23: #{tpu_custom_call.1} parent=1 // pred_check_branch
      %103 = sbr.rel (0) target = $region25
    $region24: #{tpu_custom_call.1} parent=1 // pred_region
      %104 = dma.done [#allocation4], 384
    $region25: #{tpu_custom_call.1} parent=1 // pred_fallthru
      _
    %105 = vsyncpa [#allocation3], 1
    %106 = vsyncpa [#allocation6], 1
    %107 = vsyncpa [#allocation4], 1

</llo_original>
